<compile_context>
chip_gen: v7x
topology: tpu7x:2x2x1
jax: 0.10.0
libtpu: 0.0.40
codegen_flags: <defaults>
</compile_context>

<pallas_src>
import functools
import math

import jax
import jax.numpy as jnp
from jax.experimental import pallas as pl
from jax.experimental.pallas import tpu as pltpu


# ------------------------- config (deterministic, in-script) ----------------
class GaussianCfg:
    max_range = 1.0
    isotropic = False
    const_opacity = False
    const_scale = False


class IsoCfg(GaussianCfg):
    isotropic = True


_GROUP = 64              # gaussians packed per lane-row
_LANES = _GROUP * 14     # 896 = 7 * 128  -> lane-dense, unmasked stores


# ------------------------------ Pallas kernel --------------------------------
def _gaussian_kernel(feats_ref, out_ref, *, max_range, isotropic,
                     const_opacity, const_scale):
    x = feats_ref[...].astype(jnp.float32)                  # (T, 896)
    lanes = x.shape[-1]

    # Channel id of every lane (0..13 repeating), hoisted to a single
    # (1, lanes) row; broadcasting covers the sublane dimension.
    ch = jax.lax.broadcasted_iota(jnp.int32, (1, lanes), 1) % 14

    def ring_sum(v, ks):
        # symmetric circular neighbour sum: v[c] + sum_k (v[c+k] + v[c-k]);
        # masked inputs guarantee no leakage across 14-channel groups.
        acc = v
        for k in ks:
            acc = acc + pltpu.roll(v, k, axis=1)
            acc = acc + pltpu.roll(v, lanes - k, axis=1)
        return acc

    # ---- shared transcendentals: one exp feeds sigmoid AND softplus --------
    ex = jnp.exp(-jnp.abs(x))                        # exp(-|x|), never overflows
    inv1p = 1.0 / (1.0 + ex)                         # single EUP recip
    sig = jnp.where(x >= 0.0, inv1p, ex * inv1p)     # == sigmoid(x), stable

    # ---- fold activations class-by-class into `out` (short live ranges) ----
    # pos (ch 0..2): clamp (other lanes get overwritten below)
    out = jnp.clip(x, -max_range, max_range)

    # opacity (ch 3) + rgb (ch 11..13): sigmoid (opacity may be constant 1)
    if const_opacity:
        out = jnp.where(ch >= 11, sig, out)
        out = jnp.where(ch == 3, 1.0, out)
    else:
        out = jnp.where((ch == 3) | (ch >= 11), sig, out)

    # scale (ch 4..6): 0.01 * softplus (or constant 0.005), optional iso mean
    is_scale = (ch >= 4) & (ch <= 6)
    if const_scale:
        out = jnp.where(is_scale, 0.005, out)
    else:
        # stable softplus sharing `ex`: log1p(exp(x)) = max(x,0)+log1p(exp(-|x|))
        sp = 0.01 * (jnp.maximum(x, 0.0) + jnp.log1p(ex))
        if isotropic:
            sp = ring_sum(jnp.where(is_scale, sp, 0.0), (1, 2)) * (1.0 / 3.0)
        out = jnp.where(is_scale, sp, out)

    # rotation (ch 7..10): L2-normalized quaternion (or identity quaternion)
    is_quat = (ch >= 7) & (ch <= 10)
    if isotropic:
        out = jnp.where(is_quat, jnp.where(ch == 7, 1.0, 0.0), out)
    else:
        sq = jnp.where(is_quat, x * x, 0.0)
        sumsq = ring_sum(sq, (1, 2, 3))              # per-gaussian ||q||^2
        # F.normalize: x / max(||x||, 1e-12) == x * rsqrt(max(sumsq, 1e-24))
        inv_norm = jax.lax.rsqrt(jnp.maximum(sumsq, 1e-24))
        out = jnp.where(is_quat, x * inv_norm, out)

    out_ref[...] = out.astype(out_ref.dtype)         # single full-width store


# ------------------------------- wrapper --------------------------------------
def _default_tile_rows():
    """Generation-aware tile cap (rows of the 896-lane slab)."""
    try:
        kind = jax.devices()[0].device_kind.lower()
    except Exception:
        return 1024
    if ("v7" in kind) or ("7x" in kind) or ("v6" in kind):
        return 2048          # 28 MiB of double-buffered VMEM at f32
    return 1024              # v5e / unknown: 14 MiB fits the 16 MiB default


def gaussian_model_forward(feats, cfg=GaussianCfg, tile_rows=None):
    """feats: [..., 14] float array -> activated gaussians [..., 14]."""
    assert feats.shape[-1] == 14
    orig_shape = feats.shape
    n = math.prod(orig_shape[:-1]) if len(orig_shape) > 1 else 1
    flat = feats.reshape(n, 14)

    # Group 64 gaussians per 896-lane row; pad rows only if N % 64 != 0.
    # TODO(synk): the pad / trailing slice in the ragged case copies the whole
    # array (+~50% HBM traffic); a masked in-kernel tail path would avoid it.
    n_pad = pl.cdiv(n, _GROUP) * _GROUP
    if n_pad != n:
        flat = jnp.pad(flat, ((0, n_pad - n), (0, 0)))
    r = n_pad // _GROUP
    slab = flat.reshape(r, _LANES)                  # metadata-only reshape

    itemsize = jnp.dtype(feats.dtype).itemsize
    sub = 8 * max(1, 4 // itemsize)                 # f32 -> 8, bf16 -> 16, i8 -> 32

    if tile_rows is None:
        tile_rows = _default_tile_rows()
    # Tile: sublane-aligned, capped at tile_rows, and split so the grid keeps
    # >= 2 steps whenever the slab is big enough (v7x has 2 TensorCores).
    tile = min(tile_rows, max(sub, pl.cdiv(pl.cdiv(r, 2), sub) * sub))
    if tile >= r:
        tile = r                                    # full-extent block is legal
    grid = pl.cdiv(r, tile)

    # Double-buffered in + out blocks plus headroom; keep below v7x's 64 MiB.
    vmem_bytes = int(min(max(4 * tile * _LANES * itemsize + (2 << 20), 16 << 20),
                         60 << 20))

    kernel = functools.partial(
        _gaussian_kernel,
        max_range=float(cfg.max_range),
        isotropic=bool(cfg.isotropic),
        const_opacity=bool(cfg.const_opacity),
        const_scale=bool(cfg.const_scale),
    )

    out = pl.pallas_call(
        kernel,
        out_shape=jax.ShapeDtypeStruct((r, _LANES), feats.dtype),
        grid_spec=pltpu.PrefetchScalarGridSpec(
            num_scalar_prefetch=0,
            grid=(grid,),
            in_specs=[pl.BlockSpec((tile, _LANES), lambda i: (i, 0))],
            out_specs=pl.BlockSpec((tile, _LANES), lambda i: (i, 0)),
        ),
        compiler_params=pltpu.CompilerParams(
            dimension_semantics=("parallel",),
            vmem_limit_bytes=vmem_bytes),
    )(slab)

    out = out.reshape(n_pad, 14)
    if n_pad != n:
        out = out[:n]
    return out.reshape(orig_shape)


# ------------------------------ reference (plain JAX) -------------------------
def _reference(feats, cfg=GaussianCfg):
    x = feats.astype(jnp.float32)
    pos = jnp.clip(x[..., 0:3], -cfg.max_range, cfg.max_range)
    opacity = (jnp.ones_like(x[..., 3:4]) if cfg.const_opacity
               else jax.nn.sigmoid(x[..., 3:4]))
    scale = (jnp.ones_like(x[..., 4:7]) * 0.005 if cfg.const_scale
             else 0.01 * jax.nn.softplus(x[..., 4:7]))
    if cfg.isotropic:
        scale = jnp.broadcast_to(jnp.mean(scale, -1, keepdims=True), scale.shape)
        rotation = jnp.concatenate(
            [jnp.ones_like(x[..., 7:8]), jnp.zeros_like(x[..., 8:11])], -1)
    else:
        norm = jnp.sqrt(jnp.sum(x[..., 7:11] ** 2, -1, keepdims=True))
        rotation = x[..., 7:11] / jnp.maximum(norm, 1e-12)
    rgbs = jax.nn.sigmoid(x[..., 11:14])
    return jnp.concatenate(
        [pos, opacity, scale, rotation, rgbs], -1).astype(feats.dtype)


if __name__ == "__main__":
    key = jax.random.PRNGKey(0)
    # small shape consistent with the module: [..., 14]
    feats = jax.random.normal(key, (2, 256, 14), dtype=jnp.float32) * 3.0

    # default (anisotropic) config
    out = gaussian_model_forward(feats, GaussianCfg)
    out = jax.block_until_ready(out)
    ref = _reference(feats, GaussianCfg)
    assert out.shape == feats.shape
    assert jnp.allclose(out, ref, atol=1e-5, rtol=1e-5)

    # isotropic config (exercises the scale-mean ring sum + identity quaternion)
    out_iso = jax.block_until_ready(gaussian_model_forward(feats, IsoCfg))
    ref_iso = _reference(feats, IsoCfg)
    assert jnp.allclose(out_iso, ref_iso, atol=1e-5, rtol=1e-5)

    print("KERNEL_OK")
</pallas_src>

<mosaic_0001>
module attributes {stable_mosaic.version = 11 : i64} {
  func.func @_gaussian_kernel(%arg0: i32, %arg1: memref<8x896xf32, #tpu.memory_space<vmem>>, %arg2: memref<8x896xf32, #tpu.memory_space<vmem>>) attributes {dimension_semantics = [#tpu.dimension_semantics<parallel>], iteration_bounds = array<i64: 1>, scalar_prefetch = 0 : i64, scratch_operands = 0 : i64, tpu.core_type = #tpu.core_type<tc>, window_params = [{transform_indices = @transform_0, window_bounds = array<i64: 8, 896>}, {transform_indices = @transform_1, window_bounds = array<i64: 8, 896>}]} {
    %c0 = arith.constant 0 : index
    %c0_0 = arith.constant 0 : index
    %0 = vector.load %arg1[%c0, %c0_0] : memref<8x896xf32, #tpu.memory_space<vmem>>, vector<8x896xf32>
    %1 = tpu.iota {dimensions = array<i32: 1>} : vector<1x896xi32>
    %c14_i32 = arith.constant 14 : i32
    %c0_i32 = arith.constant 0 : i32
    %2 = arith.cmpi eq, %c14_i32, %c0_i32 : i32
    %c1_i32 = arith.constant 1 : i32
    %3 = arith.select %2, %c1_i32, %c14_i32 : i32
    %4 = vector.broadcast %3 : i32 to vector<1x896xi32>
    %5 = arith.remsi %1, %4 : vector<1x896xi32>
    %c0_i32_1 = arith.constant 0 : i32
    %6 = vector.broadcast %c0_i32_1 : i32 to vector<1x896xi32>
    %7 = arith.cmpi ne, %5, %6 : vector<1x896xi32>
    %c0_i32_2 = arith.constant 0 : i32
    %8 = vector.broadcast %c0_i32_2 : i32 to vector<1x896xi32>
    %9 = arith.cmpi slt, %5, %8 : vector<1x896xi32>
    %c0_i32_3 = arith.constant 0 : i32
    %10 = arith.cmpi slt, %3, %c0_i32_3 : i32
    %11 = vector.broadcast %10 : i1 to vector<1x896xi1>
    %12 = vector.broadcast %11 : vector<1x896xi1> to vector<1x896xi1>
    %13 = arith.xori %9, %12 : vector<1x896xi1>
    %14 = arith.andi %13, %7 : vector<1x896xi1>
    %15 = vector.broadcast %3 : i32 to vector<1x896xi32>
    %16 = arith.addi %5, %15 : vector<1x896xi32>
    %17 = arith.select %14, %16, %5 : vector<1x896xi1>, vector<1x896xi32>
    %18 = math.absf %0 : vector<8x896xf32>
    %cst = arith.constant 0.000000e+00 : f32
    %19 = vector.broadcast %cst : f32 to vector<8x896xf32>
    %20 = arith.subf %19, %18 : vector<8x896xf32>
    %21 = math.exp %20 : vector<8x896xf32>
    %cst_4 = arith.constant 1.000000e+00 : f32
    %22 = vector.broadcast %cst_4 : f32 to vector<8x896xf32>
    %23 = arith.addf %22, %21 : vector<8x896xf32>
    %cst_5 = arith.constant 1.000000e+00 : f32
    %24 = vector.broadcast %cst_5 : f32 to vector<8x896xf32>
    %25 = arith.divf %24, %23 : vector<8x896xf32>
    %cst_6 = arith.constant 0.000000e+00 : f32
    %26 = vector.broadcast %cst_6 : f32 to vector<8x896xf32>
    %27 = arith.cmpf oge, %0, %26 : vector<8x896xf32>
    %28 = arith.mulf %21, %25 : vector<8x896xf32>
    %29 = arith.select %27, %25, %28 : vector<8x896xi1>, vector<8x896xf32>
    %cst_7 = arith.constant -1.000000e+00 : f32
    %cst_8 = arith.constant 1.000000e+00 : f32
    %30 = vector.broadcast %cst_7 : f32 to vector<8x896xf32>
    %31 = arith.maximumf %30, %0 : vector<8x896xf32>
    %32 = vector.broadcast %cst_8 : f32 to vector<8x896xf32>
    %33 = arith.minimumf %32, %31 : vector<8x896xf32>
    %c3_i32 = arith.constant 3 : i32
    %34 = vector.broadcast %c3_i32 : i32 to vector<1x896xi32>
    %35 = arith.cmpi eq, %17, %34 : vector<1x896xi32>
    %c11_i32 = arith.constant 11 : i32
    %36 = vector.broadcast %c11_i32 : i32 to vector<1x896xi32>
    %37 = arith.cmpi sge, %17, %36 : vector<1x896xi32>
    %38 = arith.ori %35, %37 : vector<1x896xi1>
    %39 = vector.shape_cast %38 : vector<1x896xi1> to vector<1x896xi1>
    %40 = vector.broadcast %39 : vector<1x896xi1> to vector<8x896xi1>
    %41 = arith.select %40, %29, %33 : vector<8x896xi1>, vector<8x896xf32>
    %c4_i32 = arith.constant 4 : i32
    %42 = vector.broadcast %c4_i32 : i32 to vector<1x896xi32>
    %43 = arith.cmpi sge, %17, %42 : vector<1x896xi32>
    %c6_i32 = arith.constant 6 : i32
    %44 = vector.broadcast %c6_i32 : i32 to vector<1x896xi32>
    %45 = arith.cmpi sle, %17, %44 : vector<1x896xi32>
    %46 = arith.andi %43, %45 : vector<1x896xi1>
    %cst_9 = arith.constant 0.000000e+00 : f32
    %47 = vector.broadcast %cst_9 : f32 to vector<8x896xf32>
    %48 = arith.maximumf %0, %47 : vector<8x896xf32>
    %49 = math.log1p %21 : vector<8x896xf32>
    %50 = arith.addf %48, %49 : vector<8x896xf32>
    %cst_10 = arith.constant 0.00999999977 : f32
    %51 = vector.broadcast %cst_10 : f32 to vector<8x896xf32>
    %52 = arith.mulf %51, %50 : vector<8x896xf32>
    %53 = vector.shape_cast %46 : vector<1x896xi1> to vector<1x896xi1>
    %54 = vector.broadcast %53 : vector<1x896xi1> to vector<8x896xi1>
    %55 = arith.select %54, %52, %41 : vector<8x896xi1>, vector<8x896xf32>
    %c7_i32 = arith.constant 7 : i32
    %56 = vector.broadcast %c7_i32 : i32 to vector<1x896xi32>
    %57 = arith.cmpi sge, %17, %56 : vector<1x896xi32>
    %c10_i32 = arith.constant 10 : i32
    %58 = vector.broadcast %c10_i32 : i32 to vector<1x896xi32>
    %59 = arith.cmpi sle, %17, %58 : vector<1x896xi32>
    %60 = arith.andi %57, %59 : vector<1x896xi1>
    %61 = arith.mulf %0, %0 : vector<8x896xf32>
    %cst_11 = arith.constant 0.000000e+00 : f32
    %62 = vector.shape_cast %60 : vector<1x896xi1> to vector<1x896xi1>
    %63 = vector.broadcast %62 : vector<1x896xi1> to vector<8x896xi1>
    %64 = vector.broadcast %cst_11 : f32 to vector<8x896xf32>
    %65 = arith.select %63, %61, %64 : vector<8x896xi1>, vector<8x896xf32>
    %c1_i32_12 = arith.constant 1 : i32
    %66 = tpu.dynamic_rotate %65 by %c1_i32_12 dim 1 : vector<8x896xf32>, i32 -> vector<8x896xf32>
    %67 = arith.addf %65, %66 : vector<8x896xf32>
    %c895_i32 = arith.constant 895 : i32
    %68 = tpu.dynamic_rotate %65 by %c895_i32 dim 1 : vector<8x896xf32>, i32 -> vector<8x896xf32>
    %69 = arith.addf %67, %68 : vector<8x896xf32>
    %c2_i32 = arith.constant 2 : i32
    %70 = tpu.dynamic_rotate %65 by %c2_i32 dim 1 : vector<8x896xf32>, i32 -> vector<8x896xf32>
    %71 = arith.addf %69, %70 : vector<8x896xf32>
    %c894_i32 = arith.constant 894 : i32
    %72 = tpu.dynamic_rotate %65 by %c894_i32 dim 1 : vector<8x896xf32>, i32 -> vector<8x896xf32>
    %73 = arith.addf %71, %72 : vector<8x896xf32>
    %c3_i32_13 = arith.constant 3 : i32
    %74 = tpu.dynamic_rotate %65 by %c3_i32_13 dim 1 : vector<8x896xf32>, i32 -> vector<8x896xf32>
    %75 = arith.addf %73, %74 : vector<8x896xf32>
    %c893_i32 = arith.constant 893 : i32
    %76 = tpu.dynamic_rotate %65 by %c893_i32 dim 1 : vector<8x896xf32>, i32 -> vector<8x896xf32>
    %77 = arith.addf %75, %76 : vector<8x896xf32>
    %cst_14 = arith.constant 1.000000e-24 : f32
    %78 = vector.broadcast %cst_14 : f32 to vector<8x896xf32>
    %79 = arith.maximumf %77, %78 : vector<8x896xf32>
    %80 = math.rsqrt %79 : vector<8x896xf32>
    %81 = arith.mulf %0, %80 : vector<8x896xf32>
    %82 = vector.shape_cast %60 : vector<1x896xi1> to vector<1x896xi1>
    %83 = vector.broadcast %82 : vector<1x896xi1> to vector<8x896xi1>
    %84 = arith.select %83, %81, %55 : vector<8x896xi1>, vector<8x896xf32>
    %c0_15 = arith.constant 0 : index
    %c0_16 = arith.constant 0 : index
    %85 = vector.load %arg2[%c0_15, %c0_16] : memref<8x896xf32, #tpu.memory_space<vmem>>, vector<8x896xf32>
    tpu.vector_store %arg2[%c0_15, %c0_16], %84 {strides = array<i32>} : memref<8x896xf32, #tpu.memory_space<vmem>>, vector<8x896xf32>,
    return
  }
  func.func @transform_0(%arg0: i32) -> (i32, i32) {
    %c0_i32 = arith.constant 0 : i32
    %c0_i32_0 = arith.constant 0 : i32
    return %arg0, %c0_i32 : i32, i32
  }
  func.func @transform_1(%arg0: i32) -> (i32, i32) {
    %c0_i32 = arith.constant 0 : i32
    %c0_i32_0 = arith.constant 0 : i32
    return %arg0, %c0_i32 : i32, i32
  }
}

</mosaic_0001>

<llo_original>
// kernel: tpu_custom_call.1
$region0: #{tpu_custom_call.1}
  #allocation0 [shape = 'u32[]', space=smem, size = 0x4, offset = 0x4, fixed_abs, tag = 'smem constant byte address 0x4 - core index']
  #allocation1 [shape = 'u32[144,128]{1,0:T(1,128)}', space=vmem, size = 0x12000, scoped, tag = 'internal scratch']
  %s0 = inlined_call_operand.hbm [shape: f32[8,896], index: 0, kind: input, shape index: {}]
  %s1 = inlined_call_operand.hbm [shape: f32[8,896], index: 1, kind: output, shape index: {}]
  %s2 = sld [smem:[#allocation0]]
  $region18: #{tpu_custom_call.1} parent=0
    _
  %s4 = ssub.s32 1, %s2
  %s5 = scalar_select 0, %s4, %s2
  $region1: #{tpu_custom_call.1} parent=0
    #allocation2 [shape = 'u8[28672]{0}', space=vmem, size = 0x7000, scoped, tag = 'input window, operand 0, single buffered']
    #allocation3 [shape = 's32[1]{0}', space=sflag, size = 0x4, scoped, tag = 'scoped memory for tpu_custom_call.1']
    #allocation4 [shape = 's32[1]{0}', space=sflag, size = 0x4, scoped, tag = 'scoped memory for tpu_custom_call.1']
    #allocation5 [shape = 'u8[28672]{0}', space=vmem, size = 0x7000, scoped, tag = 'output window, operand 0, single buffered']
    %6 = vsyncpa [#allocation3], 0
    %7 = vsyncpa [#allocation4], 0
    // Predicated region
    $region2: #{tpu_custom_call.1} parent=1 // pred_check
      _
    $region3: #{tpu_custom_call.1} parent=1 // pred_check_branch
      %9 = sbr.rel (0) target = $region5
    $region4: #{tpu_custom_call.1} parent=1 // pred_region
      %s11 = ssub.s32 896, 896
      %12 = vsyncadd [#allocation3], %s11
      %s14 = sshll.u32 [#allocation2], 4
      %s15 = int_to_ptr.vmem [resolvable:$true] %s14
      %17 = dma.hbm_to_vmem [thread:$0]  %s0, 896, %s15, [#allocation3]
    $region5: #{tpu_custom_call.1} parent=1 // pred_fallthru
      _
    // Predicated region
    $region6: #{tpu_custom_call.1} parent=1 // pred_check
      _
    $region7: #{tpu_custom_call.1} parent=1 // pred_check_branch
      %19 = sbr.rel (0) target = $region9
    $region8: #{tpu_custom_call.1} parent=1 // pred_region
      %20 = dma.done [#allocation3], 896
    $region9: #{tpu_custom_call.1} parent=1 // pred_fallthru
      _
    %v21 = vld [vmem:[#allocation2] sm:$0xff]
    %v22 = vld [vmem:[#allocation2 + $0x8] sm:$0xff]
    %v23 = vld [vmem:[#allocation2 + $0x10] sm:$0xff]
    %v24 = vld [vmem:[#allocation2 + $0x18] sm:$0xff]
    %v25 = vld [vmem:[#allocation2 + $0x20] sm:$0xff]
    %v26 = vld [vmem:[#allocation2 + $0x28] sm:$0xff]
    %v27 = vld [vmem:[#allocation2 + $0x30] sm:$0xff]
    %v28 = vlaneseq
    %v29 = vand.u32 %v28, 127
    %v30 = vadd.s32 %v29, 128
    %v31 = vadd.s32 %v29, 256
    %v32 = vadd.s32 %v29, 384
    %v33 = vadd.s32 %v29, 512
    %v34 = vadd.s32 %v29, 640
    %v35 = vadd.s32 %v29, 768
    %vm36 = vcmp.lt.s32.totalorder %v29, 0
    %v37 = vsub.s32 0, %v29
    %v38 = vsel %vm36, %v37, %v29
    %v39 = vmul.u32.u64.compose %v38, 2454267026
    %v40 = vextract.low.u32 %v39
    %v41 = vextract.high.u32 %v39
    %vm42 = vc.u32 %v40, 2454267026
    %v43 = vsel %vm42, 1, 0
    %v44 = vadd.s32 %v41, %v43
    %v45 = vshrl.u32 %v44, 3
    %v46 = vmul.u32 %v45, 14
    %v47 = vsub.s32 %v38, %v46
    %v48 = vsub.s32 0, %v47
    %v49 = vsel %vm36, %v48, %v47
    %vm50 = vcmp.lt.s32.totalorder %v30, 0
    %v51 = vsub.s32 0, %v30
    %v52 = vsel %vm50, %v51, %v30
    %v53 = vmul.u32.u64.compose %v52, 2454267026
    %v54 = vextract.low.u32 %v53
    %v55 = vextract.high.u32 %v53
    %vm56 = vc.u32 %v54, 2454267026
    %v57 = vsel %vm56, 1, 0
    %v58 = vadd.s32 %v55, %v57
    %v59 = vshrl.u32 %v58, 3
    %v60 = vmul.u32 %v59, 14
    %v61 = vsub.s32 %v52, %v60
    %v62 = vsub.s32 0, %v61
    %v63 = vsel %vm50, %v62, %v61
    %vm64 = vcmp.lt.s32.totalorder %v31, 0
    %v65 = vsub.s32 0, %v31
    %v66 = vsel %vm64, %v65, %v31
    %v67 = vmul.u32.u64.compose %v66, 2454267026
    %v68 = vextract.low.u32 %v67
    %v69 = vextract.high.u32 %v67
    %vm70 = vc.u32 %v68, 2454267026
    %v71 = vsel %vm70, 1, 0
    %v72 = vadd.s32 %v69, %v71
    %v73 = vshrl.u32 %v72, 3
    %v74 = vmul.u32 %v73, 14
    %v75 = vsub.s32 %v66, %v74
    %v76 = vsub.s32 0, %v75
    %v77 = vsel %vm64, %v76, %v75
    %vm78 = vcmp.lt.s32.totalorder %v32, 0
    %v79 = vsub.s32 0, %v32
    %v80 = vsel %vm78, %v79, %v32
    %v81 = vmul.u32.u64.compose %v80, 2454267026
    %v82 = vextract.low.u32 %v81
    %v83 = vextract.high.u32 %v81
    %vm84 = vc.u32 %v82, 2454267026
    %v85 = vsel %vm84, 1, 0
    %v86 = vadd.s32 %v83, %v85
    %v87 = vshrl.u32 %v86, 3
    %v88 = vmul.u32 %v87, 14
    %v89 = vsub.s32 %v80, %v88
    %v90 = vsub.s32 0, %v89
    %v91 = vsel %vm78, %v90, %v89
    %vm92 = vcmp.lt.s32.totalorder %v33, 0
    %v93 = vsub.s32 0, %v33
    %v94 = vsel %vm92, %v93, %v33
    %v95 = vmul.u32.u64.compose %v94, 2454267026
    %v96 = vextract.low.u32 %v95
    %v97 = vextract.high.u32 %v95
    %vm98 = vc.u32 %v96, 2454267026
    %v99 = vsel %vm98, 1, 0
    %v100 = vadd.s32 %v97, %v99
    %v101 = vshrl.u32 %v100, 3
    %v102 = vmul.u32 %v101, 14
    %v103 = vsub.s32 %v94, %v102
    %v104 = vsub.s32 0, %v103
    %v105 = vsel %vm92, %v104, %v103
    %vm106 = vcmp.lt.s32.totalorder %v34, 0
    %v107 = vsub.s32 0, %v34
    %v108 = vsel %vm106, %v107, %v34
    %v109 = vmul.u32.u64.compose %v108, 2454267026
    %v110 = vextract.low.u32 %v109
    %v111 = vextract.high.u32 %v109
    %vm112 = vc.u32 %v110, 2454267026
    %v113 = vsel %vm112, 1, 0
    %v114 = vadd.s32 %v111, %v113
    %v115 = vshrl.u32 %v114, 3
    %v116 = vmul.u32 %v115, 14
    %v117 = vsub.s32 %v108, %v116
    %v118 = vsub.s32 0, %v117
    %v119 = vsel %vm106, %v118, %v117
    %vm120 = vcmp.lt.s32.totalorder %v35, 0
    %v121 = vsub.s32 0, %v35
    %v122 = vsel %vm120, %v121, %v35
    %v123 = vmul.u32.u64.compose %v122, 2454267026
    %v124 = vextract.low.u32 %v123
    %v125 = vextract.high.u32 %v123
    %vm126 = vc.u32 %v124, 2454267026
    %v127 = vsel %vm126, 1, 0
    %v128 = vadd.s32 %v125, %v127
    %v129 = vshrl.u32 %v128, 3
    %v130 = vmul.u32 %v129, 14
    %v131 = vsub.s32 %v122, %v130
    %v132 = vsub.s32 0, %v131
    %v133 = vsel %vm120, %v132, %v131
    %vm134 = vcmp.ne.s32.totalorder %v49, 0
    %vm135 = vcmp.ne.s32.totalorder %v63, 0
    %vm136 = vcmp.ne.s32.totalorder %v77, 0
    %vm137 = vcmp.ne.s32.totalorder %v91, 0
    %vm138 = vcmp.ne.s32.totalorder %v105, 0
    %vm139 = vcmp.ne.s32.totalorder %v119, 0
    %vm140 = vcmp.ne.s32.totalorder %v133, 0
    %vm141 = vcmp.lt.s32.totalorder %v49, 0
    %vm142 = vcmp.lt.s32.totalorder %v63, 0
    %vm143 = vcmp.lt.s32.totalorder %v77, 0
    %vm144 = vcmp.lt.s32.totalorder %v91, 0
    %vm145 = vcmp.lt.s32.totalorder %v105, 0
    %vm146 = vcmp.lt.s32.totalorder %v119, 0
    %vm147 = vcmp.lt.s32.totalorder %v133, 0
    %vm148 = vmand %vm141, %vm134
    %vm149 = vmand %vm142, %vm135
    %vm150 = vmand %vm143, %vm136
    %vm151 = vmand %vm144, %vm137
    %vm152 = vmand %vm145, %vm138
    %vm153 = vmand %vm146, %vm139
    %vm154 = vmand %vm147, %vm140
    %v155 = vadd.s32 %v49, 14
    %v156 = vadd.s32 %v63, 14
    %v157 = vadd.s32 %v77, 14
    %v158 = vadd.s32 %v91, 14
    %v159 = vadd.s32 %v105, 14
    %v160 = vadd.s32 %v119, 14
    %v161 = vadd.s32 %v133, 14
    %v162 = vsel %vm148, %v155, %v49
    %v163 = vsel %vm149, %v156, %v63
    %v164 = vsel %vm150, %v157, %v77
    %v165 = vsel %vm151, %v158, %v91
    %v166 = vsel %vm152, %v159, %v105
    %v167 = vsel %vm153, %v160, %v119
    %v168 = vsel %vm154, %v161, %v133
    %v169 = vand.u32 2147483647, %v21
    %v170 = vand.u32 2147483647, %v22
    %v171 = vand.u32 2147483647, %v23
    %v172 = vand.u32 2147483647, %v24
    %v173 = vand.u32 2147483647, %v25
    %v174 = vand.u32 2147483647, %v26
    %v175 = vand.u32 2147483647, %v27
    %v176 = vsub.f32 0.0, %v169
    %v177 = vsub.f32 0.0, %v170
    %v178 = vsub.f32 0.0, %v171
    %v179 = vsub.f32 0.0, %v172
    %v180 = vsub.f32 0.0, %v173
    %v181 = vsub.f32 0.0, %v174
    %v182 = vsub.f32 0.0, %v175
    %v183 = vmul.f32 %v176, 1.442695
    %v184 = vpow.pop %v183
    %v185 = vmul.f32 %v177, 1.442695
    %v186 = vpow.pop %v185
    %v187 = vmul.f32 %v178, 1.442695
    %v188 = vpow.pop %v187
    %v189 = vmul.f32 %v179, 1.442695
    %v190 = vpow.pop %v189
    %v191 = vmul.f32 %v180, 1.442695
    %v192 = vpow.pop %v191
    %v193 = vmul.f32 %v181, 1.442695
    %v194 = vpow.pop %v193
    %v195 = vmul.f32 %v182, 1.442695
    %v196 = vpow.pop %v195
    %v197 = vadd.f32 %v184, 1.0
    %v198 = vadd.f32 %v186, 1.0
    %v199 = vadd.f32 %v188, 1.0
    %v200 = vadd.f32 %v190, 1.0
    %v201 = vadd.f32 %v192, 1.0
    %v202 = vadd.f32 %v194, 1.0
    %v203 = vadd.f32 %v196, 1.0
    %v204 = vrcp.pop %v197
    %v205 = vmul.f32 1.0, %v204
    %v206 = vrcp.pop %v198
    %v207 = vmul.f32 1.0, %v206
    %v208 = vrcp.pop %v199
    %v209 = vmul.f32 1.0, %v208
    %v210 = vrcp.pop %v200
    %v211 = vmul.f32 1.0, %v210
    %v212 = vrcp.pop %v201
    %v213 = vmul.f32 1.0, %v212
    %v214 = vrcp.pop %v202
    %v215 = vmul.f32 1.0, %v214
    %v216 = vrcp.pop %v203
    %v217 = vmul.f32 1.0, %v216
    %vm218 = vcmp.ge.f32.partialorder %v21, 0.0
    %vm219 = vcmp.ge.f32.partialorder %v22, 0.0
    %vm220 = vcmp.ge.f32.partialorder %v23, 0.0
    %vm221 = vcmp.ge.f32.partialorder %v24, 0.0
    %vm222 = vcmp.ge.f32.partialorder %v25, 0.0
    %vm223 = vcmp.ge.f32.partialorder %v26, 0.0
    %vm224 = vcmp.ge.f32.partialorder %v27, 0.0
    %v225 = vmul.f32 %v184, %v205
    %v226 = vmul.f32 %v186, %v207
    %v227 = vmul.f32 %v188, %v209
    %v228 = vmul.f32 %v190, %v211
    %v229 = vmul.f32 %v192, %v213
    %v230 = vmul.f32 %v194, %v215
    %v231 = vmul.f32 %v196, %v217
    %v232 = vsel %vm218, %v205, %v225
    %v233 = vsel %vm219, %v207, %v226
    %v234 = vsel %vm220, %v209, %v227
    %v235 = vsel %vm221, %v211, %v228
    %v236 = vsel %vm222, %v213, %v229
    %v237 = vsel %vm223, %v215, %v230
    %v238 = vsel %vm224, %v217, %v231
    %v239 = vmax.f32 %v21, -1.0
    %v240 = vmax.f32 %v22, -1.0
    %v241 = vmax.f32 %v23, -1.0
    %v242 = vmax.f32 %v24, -1.0
    %v243 = vmax.f32 %v25, -1.0
    %v244 = vmax.f32 %v26, -1.0
    %v245 = vmax.f32 %v27, -1.0
    %v246 = vmin.f32 %v239, 1.0
    %v247 = vmin.f32 %v240, 1.0
    %v248 = vmin.f32 %v241, 1.0
    %v249 = vmin.f32 %v242, 1.0
    %v250 = vmin.f32 %v243, 1.0
    %v251 = vmin.f32 %v244, 1.0
    %v252 = vmin.f32 %v245, 1.0
    %vm253 = vcmp.eq.s32.totalorder %v162, 3
    %vm254 = vcmp.eq.s32.totalorder %v163, 3
    %vm255 = vcmp.eq.s32.totalorder %v164, 3
    %vm256 = vcmp.eq.s32.totalorder %v165, 3
    %vm257 = vcmp.eq.s32.totalorder %v166, 3
    %vm258 = vcmp.eq.s32.totalorder %v167, 3
    %vm259 = vcmp.eq.s32.totalorder %v168, 3
    %vm260 = vcmp.ge.s32.totalorder %v162, 11
    %vm261 = vcmp.ge.s32.totalorder %v163, 11
    %vm262 = vcmp.ge.s32.totalorder %v164, 11
    %vm263 = vcmp.ge.s32.totalorder %v165, 11
    %vm264 = vcmp.ge.s32.totalorder %v166, 11
    %vm265 = vcmp.ge.s32.totalorder %v167, 11
    %vm266 = vcmp.ge.s32.totalorder %v168, 11
    %vm267 = vmor %vm253, %vm260
    %vm268 = vmor %vm254, %vm261
    %vm269 = vmor %vm255, %vm262
    %vm270 = vmor %vm256, %vm263
    %vm271 = vmor %vm257, %vm264
    %vm272 = vmor %vm258, %vm265
    %vm273 = vmor %vm259, %vm266
    %v274 = vsel %vm267, 1, 0
    %v275 = vsel %vm268, 1, 0
    %v276 = vsel %vm269, 1, 0
    %v277 = vsel %vm270, 1, 0
    %v278 = vsel %vm271, 1, 0
    %v279 = vsel %vm272, 1, 0
    %v280 = vsel %vm273, 1, 0
    %vm281 = vcmp.eq.s32.totalorder %v274, 1
    %vm282 = vcmp.eq.s32.totalorder %v275, 1
    %vm283 = vcmp.eq.s32.totalorder %v276, 1
    %vm284 = vcmp.eq.s32.totalorder %v277, 1
    %vm285 = vcmp.eq.s32.totalorder %v278, 1
    %vm286 = vcmp.eq.s32.totalorder %v279, 1
    %vm287 = vcmp.eq.s32.totalorder %v280, 1
    %v288 = vsel %vm281, %v232, %v246
    %v289 = vsel %vm282, %v233, %v247
    %v290 = vsel %vm283, %v234, %v248
    %v291 = vsel %vm284, %v235, %v249
    %v292 = vsel %vm285, %v236, %v250
    %v293 = vsel %vm286, %v237, %v251
    %v294 = vsel %vm287, %v238, %v252
    %vm295 = vcmp.ge.s32.totalorder %v162, 4
    %vm296 = vcmp.ge.s32.totalorder %v163, 4
    %vm297 = vcmp.ge.s32.totalorder %v164, 4
    %vm298 = vcmp.ge.s32.totalorder %v165, 4
    %vm299 = vcmp.ge.s32.totalorder %v166, 4
    %vm300 = vcmp.ge.s32.totalorder %v167, 4
    %vm301 = vcmp.ge.s32.totalorder %v168, 4
    %vm302 = vcmp.le.s32.totalorder %v162, 6
    %vm303 = vcmp.le.s32.totalorder %v163, 6
    %vm304 = vcmp.le.s32.totalorder %v164, 6
    %vm305 = vcmp.le.s32.totalorder %v165, 6
    %vm306 = vcmp.le.s32.totalorder %v166, 6
    %vm307 = vcmp.le.s32.totalorder %v167, 6
    %vm308 = vcmp.le.s32.totalorder %v168, 6
    %vm309 = vmand %vm295, %vm302
    %vm310 = vmand %vm296, %vm303
    %vm311 = vmand %vm297, %vm304
    %vm312 = vmand %vm298, %vm305
    %vm313 = vmand %vm299, %vm306
    %vm314 = vmand %vm300, %vm307
    %vm315 = vmand %vm301, %vm308
    %v316 = vmax.f32 %v21, 0.0
    %v317 = vmax.f32 %v22, 0.0
    %v318 = vmax.f32 %v23, 0.0
    %v319 = vmax.f32 %v24, 0.0
    %v320 = vmax.f32 %v25, 0.0
    %v321 = vmax.f32 %v26, 0.0
    %v322 = vmax.f32 %v27, 0.0
    %v323 = vadd.f32 %v184, 1.0
    %v324 = vlog2.pop %v323
    %v325 = vmul.f32 %v324, 0.6931472
    %v326 = vmul.f32 -0.5, %v184
    %v327 = vadd.f32 %v326, 1.0
    %v328 = vmul.f32 %v327, %v184
    %v329 = vand.u32 2147483647, %v184
    %vm330 = vcmp.lt.f32.partialorder %v329, 0.0004427343
    %v331 = vsel %vm330, %v328, %v325
    %v332 = vadd.f32 %v186, 1.0
    %v333 = vlog2.pop %v332
    %v334 = vmul.f32 %v333, 0.6931472
    %v335 = vmul.f32 -0.5, %v186
    %v336 = vadd.f32 %v335, 1.0
    %v337 = vmul.f32 %v336, %v186
    %v338 = vand.u32 2147483647, %v186
    %vm339 = vcmp.lt.f32.partialorder %v338, 0.0004427343
    %v340 = vsel %vm339, %v337, %v334
    %v341 = vadd.f32 %v188, 1.0
    %v342 = vlog2.pop %v341
    %v343 = vmul.f32 %v342, 0.6931472
    %v344 = vmul.f32 -0.5, %v188
    %v345 = vadd.f32 %v344, 1.0
    %v346 = vmul.f32 %v345, %v188
    %v347 = vand.u32 2147483647, %v188
    %vm348 = vcmp.lt.f32.partialorder %v347, 0.0004427343
    %v349 = vsel %vm348, %v346, %v343
    %v350 = vadd.f32 %v190, 1.0
    %v351 = vlog2.pop %v350
    %v352 = vmul.f32 %v351, 0.6931472
    %v353 = vmul.f32 -0.5, %v190
    %v354 = vadd.f32 %v353, 1.0
    %v355 = vmul.f32 %v354, %v190
    %v356 = vand.u32 2147483647, %v190
    %vm357 = vcmp.lt.f32.partialorder %v356, 0.0004427343
    %v358 = vsel %vm357, %v355, %v352
    %v359 = vadd.f32 %v192, 1.0
    %v360 = vlog2.pop %v359
    %v361 = vmul.f32 %v360, 0.6931472
    %v362 = vmul.f32 -0.5, %v192
    %v363 = vadd.f32 %v362, 1.0
    %v364 = vmul.f32 %v363, %v192
    %v365 = vand.u32 2147483647, %v192
    %vm366 = vcmp.lt.f32.partialorder %v365, 0.0004427343
    %v367 = vsel %vm366, %v364, %v361
    %v368 = vadd.f32 %v194, 1.0
    %v369 = vlog2.pop %v368
    %v370 = vmul.f32 %v369, 0.6931472
    %v371 = vmul.f32 -0.5, %v194
    %v372 = vadd.f32 %v371, 1.0
    %v373 = vmul.f32 %v372, %v194
    %v374 = vand.u32 2147483647, %v194
    %vm375 = vcmp.lt.f32.partialorder %v374, 0.0004427343
    %v376 = vsel %vm375, %v373, %v370
    %v377 = vadd.f32 %v196, 1.0
    %v378 = vlog2.pop %v377
    %v379 = vmul.f32 %v378, 0.6931472
    %v380 = vmul.f32 -0.5, %v196
    %v381 = vadd.f32 %v380, 1.0
    %v382 = vmul.f32 %v381, %v196
    %v383 = vand.u32 2147483647, %v196
    %vm384 = vcmp.lt.f32.partialorder %v383, 0.0004427343
    %v385 = vsel %vm384, %v382, %v379
    %v386 = vadd.f32 %v316, %v331
    %v387 = vadd.f32 %v317, %v340
    %v388 = vadd.f32 %v318, %v349
    %v389 = vadd.f32 %v319, %v358
    %v390 = vadd.f32 %v320, %v367
    %v391 = vadd.f32 %v321, %v376
    %v392 = vadd.f32 %v322, %v385
    %v393 = vmul.f32 %v386, 0.01
    %v394 = vmul.f32 %v387, 0.01
    %v395 = vmul.f32 %v388, 0.01
    %v396 = vmul.f32 %v389, 0.01
    %v397 = vmul.f32 %v390, 0.01
    %v398 = vmul.f32 %v391, 0.01
    %v399 = vmul.f32 %v392, 0.01
    %v400 = vsel %vm309, 1, 0
    %v401 = vsel %vm310, 1, 0
    %v402 = vsel %vm311, 1, 0
    %v403 = vsel %vm312, 1, 0
    %v404 = vsel %vm313, 1, 0
    %v405 = vsel %vm314, 1, 0
    %v406 = vsel %vm315, 1, 0
    %vm407 = vcmp.eq.s32.totalorder %v400, 1
    %vm408 = vcmp.eq.s32.totalorder %v401, 1
    %vm409 = vcmp.eq.s32.totalorder %v402, 1
    %vm410 = vcmp.eq.s32.totalorder %v403, 1
    %vm411 = vcmp.eq.s32.totalorder %v404, 1
    %vm412 = vcmp.eq.s32.totalorder %v405, 1
    %vm413 = vcmp.eq.s32.totalorder %v406, 1
    %v414 = vsel %vm407, %v393, %v288
    %v415 = vsel %vm408, %v394, %v289
    %v416 = vsel %vm409, %v395, %v290
    %v417 = vsel %vm410, %v396, %v291
    %v418 = vsel %vm411, %v397, %v292
    %v419 = vsel %vm412, %v398, %v293
    %v420 = vsel %vm413, %v399, %v294
    %vm421 = vcmp.ge.s32.totalorder %v162, 7
    %vm422 = vcmp.ge.s32.totalorder %v163, 7
    %vm423 = vcmp.ge.s32.totalorder %v164, 7
    %vm424 = vcmp.ge.s32.totalorder %v165, 7
    %vm425 = vcmp.ge.s32.totalorder %v166, 7
    %vm426 = vcmp.ge.s32.totalorder %v167, 7
    %vm427 = vcmp.ge.s32.totalorder %v168, 7
    %vm428 = vcmp.le.s32.totalorder %v162, 10
    %vm429 = vcmp.le.s32.totalorder %v163, 10
    %vm430 = vcmp.le.s32.totalorder %v164, 10
    %vm431 = vcmp.le.s32.totalorder %v165, 10
    %vm432 = vcmp.le.s32.totalorder %v166, 10
    %vm433 = vcmp.le.s32.totalorder %v167, 10
    %vm434 = vcmp.le.s32.totalorder %v168, 10
    %vm435 = vmand %vm421, %vm428
    %vm436 = vmand %vm422, %vm429
    %vm437 = vmand %vm423, %vm430
    %vm438 = vmand %vm424, %vm431
    %vm439 = vmand %vm425, %vm432
    %vm440 = vmand %vm426, %vm433
    %vm441 = vmand %vm427, %vm434
    %v442 = vmul.f32 %v21, %v21
    %v443 = vmul.f32 %v22, %v22
    %v444 = vmul.f32 %v23, %v23
    %v445 = vmul.f32 %v24, %v24
    %v446 = vmul.f32 %v25, %v25
    %v447 = vmul.f32 %v26, %v26
    %v448 = vmul.f32 %v27, %v27
    %v449 = vsel %vm435, 1, 0
    %v450 = vsel %vm436, 1, 0
    %v451 = vsel %vm437, 1, 0
    %v452 = vsel %vm438, 1, 0
    %v453 = vsel %vm439, 1, 0
    %v454 = vsel %vm440, 1, 0
    %v455 = vsel %vm441, 1, 0
    %vm456 = vcmp.eq.s32.totalorder %v449, 1
    %vm457 = vcmp.eq.s32.totalorder %v450, 1
    %vm458 = vcmp.eq.s32.totalorder %v451, 1
    %vm459 = vcmp.eq.s32.totalorder %v452, 1
    %vm460 = vcmp.eq.s32.totalorder %v453, 1
    %vm461 = vcmp.eq.s32.totalorder %v454, 1
    %vm462 = vcmp.eq.s32.totalorder %v455, 1
    %v463 = vsel %vm456, %v442, 0.0
    %v464 = vsel %vm457, %v443, 0.0
    %v465 = vsel %vm458, %v444, 0.0
    %v466 = vsel %vm459, %v445, 0.0
    %v467 = vsel %vm460, %v446, 0.0
    %v468 = vsel %vm461, %v447, 0.0
    %v469 = vsel %vm462, %v448, 0.0
    %470 = vrot.lane.b32.xlu0 %v463, 1
    %v471 = vpop.permute.xlu0 %470
    %472 = vrot.lane.b32.xlu0 %v464, 1
    %v473 = vpop.permute.xlu0 %472
    %474 = vrot.lane.b32.xlu0 %v465, 1
    %v475 = vpop.permute.xlu0 %474
    %476 = vrot.lane.b32.xlu0 %v466, 1
    %v477 = vpop.permute.xlu0 %476
    %478 = vrot.lane.b32.xlu0 %v467, 1
    %v479 = vpop.permute.xlu0 %478
    %480 = vrot.lane.b32.xlu0 %v468, 1
    %v481 = vpop.permute.xlu0 %480
    %482 = vrot.lane.b32.xlu0 %v469, 1
    %v483 = vpop.permute.xlu0 %482
    %vm484 = vcmp.lt.s32.totalorder %v29, 1
    %v485 = vsel %vm484, %v481, %v483
    %v486 = vsel %vm484, %v479, %v481
    %v487 = vsel %vm484, %v477, %v479
    %v488 = vsel %vm484, %v475, %v477
    %v489 = vsel %vm484, %v473, %v475
    %v490 = vsel %vm484, %v471, %v473
    %v491 = vsel %vm484, %v483, %v471
    %v492 = vadd.f32 %v463, %v491
    %v493 = vadd.f32 %v464, %v490
    %v494 = vadd.f32 %v465, %v489
    %v495 = vadd.f32 %v466, %v488
    %v496 = vadd.f32 %v467, %v487
    %v497 = vadd.f32 %v468, %v486
    %v498 = vadd.f32 %v469, %v485
    %499 = vrot.lane.b32.xlu0 %v463, 127
    %v500 = vpop.permute.xlu0 %499
    %501 = vrot.lane.b32.xlu0 %v464, 127
    %v502 = vpop.permute.xlu0 %501
    %503 = vrot.lane.b32.xlu0 %v465, 127
    %v504 = vpop.permute.xlu0 %503
    %505 = vrot.lane.b32.xlu0 %v466, 127
    %v506 = vpop.permute.xlu0 %505
    %507 = vrot.lane.b32.xlu0 %v467, 127
    %v508 = vpop.permute.xlu0 %507
    %509 = vrot.lane.b32.xlu0 %v468, 127
    %v510 = vpop.permute.xlu0 %509
    %511 = vrot.lane.b32.xlu0 %v469, 127
    %v512 = vpop.permute.xlu0 %511
    %vm513 = vcmp.lt.s32.totalorder %v29, 127
    %v514 = vsel %vm513, %v510, %v512
    %v515 = vsel %vm513, %v508, %v510
    %v516 = vsel %vm513, %v506, %v508
    %v517 = vsel %vm513, %v504, %v506
    %v518 = vsel %vm513, %v502, %v504
    %v519 = vsel %vm513, %v500, %v502
    %v520 = vsel %vm513, %v512, %v500
    %v521 = vadd.f32 %v492, %v519
    %v522 = vadd.f32 %v493, %v518
    %v523 = vadd.f32 %v494, %v517
    %v524 = vadd.f32 %v495, %v516
    %v525 = vadd.f32 %v496, %v515
    %v526 = vadd.f32 %v497, %v514
    %v527 = vadd.f32 %v498, %v520
    %528 = vrot.lane.b32.xlu0 %v463, 2
    %v529 = vpop.permute.xlu0 %528
    %530 = vrot.lane.b32.xlu0 %v464, 2
    %v531 = vpop.permute.xlu0 %530
    %532 = vrot.lane.b32.xlu0 %v465, 2
    %v533 = vpop.permute.xlu0 %532
    %534 = vrot.lane.b32.xlu0 %v466, 2
    %v535 = vpop.permute.xlu0 %534
    %536 = vrot.lane.b32.xlu0 %v467, 2
    %v537 = vpop.permute.xlu0 %536
    %538 = vrot.lane.b32.xlu0 %v468, 2
    %v539 = vpop.permute.xlu0 %538
    %540 = vrot.lane.b32.xlu0 %v469, 2
    %v541 = vpop.permute.xlu0 %540
    %vm542 = vcmp.lt.s32.totalorder %v29, 2
    %v543 = vsel %vm542, %v539, %v541
    %v544 = vsel %vm542, %v537, %v539
    %v545 = vsel %vm542, %v535, %v537
    %v546 = vsel %vm542, %v533, %v535
    %v547 = vsel %vm542, %v531, %v533
    %v548 = vsel %vm542, %v529, %v531
    %v549 = vsel %vm542, %v541, %v529
    %v550 = vadd.f32 %v521, %v549
    %v551 = vadd.f32 %v522, %v548
    %v552 = vadd.f32 %v523, %v547
    %v553 = vadd.f32 %v524, %v546
    %v554 = vadd.f32 %v525, %v545
    %v555 = vadd.f32 %v526, %v544
    %v556 = vadd.f32 %v527, %v543
    %557 = vrot.lane.b32.xlu0 %v463, 126
    %v558 = vpop.permute.xlu0 %557
    %559 = vrot.lane.b32.xlu0 %v464, 126
    %v560 = vpop.permute.xlu0 %559
    %561 = vrot.lane.b32.xlu0 %v465, 126
    %v562 = vpop.permute.xlu0 %561
    %563 = vrot.lane.b32.xlu0 %v466, 126
    %v564 = vpop.permute.xlu0 %563
    %565 = vrot.lane.b32.xlu0 %v467, 126
    %v566 = vpop.permute.xlu0 %565
    %567 = vrot.lane.b32.xlu0 %v468, 126
    %v568 = vpop.permute.xlu0 %567
    %569 = vrot.lane.b32.xlu0 %v469, 126
    %v570 = vpop.permute.xlu0 %569
    %vm571 = vcmp.lt.s32.totalorder %v29, 126
    %v572 = vsel %vm571, %v568, %v570
    %v573 = vsel %vm571, %v566, %v568
    %v574 = vsel %vm571, %v564, %v566
    %v575 = vsel %vm571, %v562, %v564
    %v576 = vsel %vm571, %v560, %v562
    %v577 = vsel %vm571, %v558, %v560
    %v578 = vsel %vm571, %v570, %v558
    %v579 = vadd.f32 %v550, %v577
    %v580 = vadd.f32 %v551, %v576
    %v581 = vadd.f32 %v552, %v575
    %v582 = vadd.f32 %v553, %v574
    %v583 = vadd.f32 %v554, %v573
    %v584 = vadd.f32 %v555, %v572
    %v585 = vadd.f32 %v556, %v578
    %586 = vrot.lane.b32.xlu0 %v463, 3
    %v587 = vpop.permute.xlu0 %586
    %588 = vrot.lane.b32.xlu0 %v464, 3
    %v589 = vpop.permute.xlu0 %588
    %590 = vrot.lane.b32.xlu0 %v465, 3
    %v591 = vpop.permute.xlu0 %590
    %592 = vrot.lane.b32.xlu0 %v466, 3
    %v593 = vpop.permute.xlu0 %592
    %594 = vrot.lane.b32.xlu0 %v467, 3
    %v595 = vpop.permute.xlu0 %594
    %596 = vrot.lane.b32.xlu0 %v468, 3
    %v597 = vpop.permute.xlu0 %596
    %598 = vrot.lane.b32.xlu0 %v469, 3
    %v599 = vpop.permute.xlu0 %598
    %vm600 = vcmp.lt.s32.totalorder %v29, 3
    %v601 = vsel %vm600, %v597, %v599
    %v602 = vsel %vm600, %v595, %v597
    %v603 = vsel %vm600, %v593, %v595
    %v604 = vsel %vm600, %v591, %v593
    %v605 = vsel %vm600, %v589, %v591
    %v606 = vsel %vm600, %v587, %v589
    %v607 = vsel %vm600, %v599, %v587
    %v608 = vadd.f32 %v579, %v607
    %v609 = vadd.f32 %v580, %v606
    %v610 = vadd.f32 %v581, %v605
    %v611 = vadd.f32 %v582, %v604
    %v612 = vadd.f32 %v583, %v603
    %v613 = vadd.f32 %v584, %v602
    %v614 = vadd.f32 %v585, %v601
    %615 = vrot.lane.b32.xlu0 %v463, 125
    %v616 = vpop.permute.xlu0 %615
    %617 = vrot.lane.b32.xlu0 %v464, 125
    %v618 = vpop.permute.xlu0 %617
    %619 = vrot.lane.b32.xlu0 %v465, 125
    %v620 = vpop.permute.xlu0 %619
    %621 = vrot.lane.b32.xlu0 %v466, 125
    %v622 = vpop.permute.xlu0 %621
    %623 = vrot.lane.b32.xlu0 %v467, 125
    %v624 = vpop.permute.xlu0 %623
    %625 = vrot.lane.b32.xlu0 %v468, 125
    %v626 = vpop.permute.xlu0 %625
    %627 = vrot.lane.b32.xlu0 %v469, 125
    %v628 = vpop.permute.xlu0 %627
    %vm629 = vcmp.lt.s32.totalorder %v29, 125
    %v630 = vsel %vm629, %v626, %v628
    %v631 = vsel %vm629, %v624, %v626
    %v632 = vsel %vm629, %v622, %v624
    %v633 = vsel %vm629, %v620, %v622
    %v634 = vsel %vm629, %v618, %v620
    %v635 = vsel %vm629, %v616, %v618
    %v636 = vsel %vm629, %v628, %v616
    %v637 = vadd.f32 %v608, %v635
    %v638 = vadd.f32 %v609, %v634
    %v639 = vadd.f32 %v610, %v633
    %v640 = vadd.f32 %v611, %v632
    %v641 = vadd.f32 %v612, %v631
    %v642 = vadd.f32 %v613, %v630
    %v643 = vadd.f32 %v614, %v636
    %v644 = vmax.f32 %v637, 1e-24
    %v645 = vmax.f32 %v638, 1e-24
    %v646 = vmax.f32 %v639, 1e-24
    %v647 = vmax.f32 %v640, 1e-24
    %v648 = vmax.f32 %v641, 1e-24
    %v649 = vmax.f32 %v642, 1e-24
    %v650 = vmax.f32 %v643, 1e-24
    %v651 = vrsqrt.pop %v644
    %v652 = vrsqrt.pop %v645
    %v653 = vrsqrt.pop %v646
    %v654 = vrsqrt.pop %v647
    %v655 = vrsqrt.pop %v648
    %v656 = vrsqrt.pop %v649
    %v657 = vrsqrt.pop %v650
    %v658 = vmul.f32 %v21, %v651
    %v659 = vmul.f32 %v22, %v652
    %v660 = vmul.f32 %v23, %v653
    %v661 = vmul.f32 %v24, %v654
    %v662 = vmul.f32 %v25, %v655
    %v663 = vmul.f32 %v26, %v656
    %v664 = vmul.f32 %v27, %v657
    %v665 = vsel %vm456, %v658, %v414
    %v666 = vsel %vm457, %v659, %v415
    %v667 = vsel %vm458, %v660, %v416
    %v668 = vsel %vm459, %v661, %v417
    %v669 = vsel %vm460, %v662, %v418
    %v670 = vsel %vm461, %v663, %v419
    %v671 = vsel %vm462, %v664, %v420
    %672 = vst [vmem:[#allocation5] sm:$0xff] %v665
    %673 = vst [vmem:[#allocation5 + $0x8] sm:$0xff] %v666
    %674 = vst [vmem:[#allocation5 + $0x10] sm:$0xff] %v667
    %675 = vst [vmem:[#allocation5 + $0x18] sm:$0xff] %v668
    %676 = vst [vmem:[#allocation5 + $0x20] sm:$0xff] %v669
    %677 = vst [vmem:[#allocation5 + $0x28] sm:$0xff] %v670
    %678 = vst [vmem:[#allocation5 + $0x30] sm:$0xff] %v671
    // Predicated region
    $region10: #{tpu_custom_call.1} parent=1 // pred_check
      _
    $region11: #{tpu_custom_call.1} parent=1 // pred_check_branch
      %680 = sbr.rel (0) target = $region13
    $region12: #{tpu_custom_call.1} parent=1 // pred_region
      %s682 = ssub.s32 896, 896
      %683 = vsyncadd [#allocation4], %s682
      %s685 = sshll.u32 [#allocation5], 4
      %s686 = int_to_ptr.vmem [resolvable:$true] %s685
      %688 = dma.vmem_to_hbm [thread:$0]  %s686, 896, %s1, [#allocation4]
    $region13: #{tpu_custom_call.1} parent=1 // pred_fallthru
      _
    // Predicated region
    $region14: #{tpu_custom_call.1} parent=1 // pred_check
      _
    $region15: #{tpu_custom_call.1} parent=1 // pred_check_branch
      %690 = sbr.rel (0) target = $region17
    $region16: #{tpu_custom_call.1} parent=1 // pred_region
      %691 = dma.done [#allocation4], 896
    $region17: #{tpu_custom_call.1} parent=1 // pred_fallthru
      _
    %692 = vsyncpa [#allocation3], 1
    %693 = vsyncpa [#allocation4], 1

</llo_original>
